<compile_context>
chip_gen: v6e
topology: v6e:2x2x1
jax: 0.10.0
libtpu: 0.0.40
codegen_flags: <defaults>
</compile_context>

<pallas_src>
import jax
import jax.numpy as jnp
from jax import lax
from jax.experimental import pallas as pl
from jax.experimental.pallas import tpu as pltpu

F32 = jnp.float32
_TILE = 512                      # f32 tile edge for the N^2 kernels
_VMEM_LIMIT = 48 * 1024 * 1024   # explicit scoped-VMEM cap (v5e default is 16 MiB;
                                 # 48 MiB keeps headroom under v7x's 64 MiB physical)


# --------------------------------------------------------------------------
# helpers
# --------------------------------------------------------------------------
def _round_up(n, m):
    return ((n + m - 1) // m) * m


def _block_and_grid(n, tile):
    """Full-extent block for small n, else `tile`-sized blocks (caller pads)."""
    if n <= tile:
        return n, 1
    assert n % tile == 0, f"dimension {n} must be padded to a multiple of {tile}"
    return tile, n // tile


def _pad_rows(a, n_pad):
    n = a.shape[0]
    if n_pad == n:
        return a
    pad = jnp.zeros((n_pad - n,) + a.shape[1:], dtype=a.dtype)
    return jnp.concatenate([a, pad], axis=0)


def _pad_m_dim(m):
    """Pad the inducing / contraction dim: sublane-aligned, 128-aligned if big."""
    return _round_up(m, 128) if m > 128 else _round_up(m, 8)


def _rbf_direct(a, b, outputscale, inv_two_ls2):
    """Plain-JAX RBF for tiny operands (XLA fuses it; no kernel launch)."""
    d2 = jnp.sum((a[:, None, :] - b[None, :, :]) ** 2, axis=-1)
    return outputscale * jnp.exp(-inv_two_ls2 * d2)


# --------------------------------------------------------------------------
# RBF cross-covariance kernel (MXU squared distances, 2-D output grid)
# Used only for K(Z, x)-style cross covariances; falls back to plain JAX for
# sub-(8,128) outputs where a pallas_call is pure launch overhead.
# --------------------------------------------------------------------------
def _rbf_body(hyp_ref, a_ref, bt_ref, an_ref, bn_ref, o_ref):
    outputscale = hyp_ref[0]
    inv_two_ls2 = hyp_ref[1]
    ab = jnp.dot(a_ref[...], bt_ref[...], preferred_element_type=F32)  # (bq, bn)
    d2 = jnp.maximum(an_ref[...] + bn_ref[...] - 2.0 * ab, 0.0)
    o_ref[...] = outputscale * jnp.exp(-inv_two_ls2 * d2)


def rbf_covar(a, b, hypers, tile=_TILE):
    """K[i, j] = os * exp(-||a_i - b_j||^2 / (2 ls^2)).

    hypers: f32[2] = [outputscale, 1/(2 ls^2)] -- read from SMEM at run time.
    a: (na, d), b: (nb, d); each of na / nb must be <= tile or a multiple of it.
    """
    na, d = a.shape
    nb = b.shape[0]
    a = a.astype(F32)
    b = b.astype(F32)

    if na < 8 or nb < 128:
        # Too small for lane/sublane-dense Pallas blocks -> plain JAX.
        return _rbf_direct(a, b, hypers[0], hypers[1])

    bq, gq = _block_and_grid(na, tile)
    bn, gn = _block_and_grid(nb, tile)

    bt = b.T                                               # (d, nb): MXU-native rhs
    a_n = jnp.sum(a * a, axis=1, keepdims=True)            # (na, 1)
    b_n = jnp.sum(bt * bt, axis=0, keepdims=True)          # (1, nb)

    return pl.pallas_call(
        _rbf_body,
        out_shape=jax.ShapeDtypeStruct((na, nb), F32),
        grid=(gq, gn),
        in_specs=[
            pl.BlockSpec(memory_space=pltpu.MemorySpace.SMEM),   # hyperparams
            pl.BlockSpec((bq, d), lambda i, j: (i, 0)),          # a row block
            pl.BlockSpec((d, bn), lambda i, j: (0, j)),          # b^T col block
            pl.BlockSpec((bq, 1), lambda i, j: (i, 0)),          # |a|^2
            pl.BlockSpec((1, bn), lambda i, j: (0, j)),          # |b|^2
        ],
        out_specs=pl.BlockSpec((bq, bn), lambda i, j: (i, j)),
        compiler_params=pltpu.CompilerParams(
            dimension_semantics=("parallel", "parallel"),
            vmem_limit_bytes=_VMEM_LIMIT),
    )(hypers, a, bt, a_n, b_n)


# --------------------------------------------------------------------------
# Fused predictive-covariance kernel: RBF(x,x) * RBF(c,c) + interp^T(S-I)interp
# + diagonal jitter, all per output tile, no Np^2 intermediates in HBM.
# --------------------------------------------------------------------------
def _predictive_body(scal_ref,
                     xr_ref, xct_ref, xnr_ref, xnc_ref,
                     cr_ref, cct_ref, cnr_ref, cnc_ref,
                     it_ref, mi_ref, cov_ref):
    jitter = scal_ref[0]
    os_lat, inv2_lat = scal_ref[1], scal_ref[2]
    os_inp, inv2_inp = scal_ref[3], scal_ref[4]

    # K_X(x, x) tile via the gram identity -> MXU (coords are centered upstream)
    xx = jnp.dot(xr_ref[...], xct_ref[...], preferred_element_type=F32)
    d2x = jnp.maximum(xnr_ref[...] + xnc_ref[...] - 2.0 * xx, 0.0)
    kxx = os_lat * jnp.exp(-inv2_lat * d2x)

    # K_C(c, c) tile
    cc = jnp.dot(cr_ref[...], cct_ref[...], preferred_element_type=F32)
    d2c = jnp.maximum(cnr_ref[...] + cnc_ref[...] - 2.0 * cc, 0.0)
    kcc = os_inp * jnp.exp(-inv2_inp * d2c)

    # correction interp^T (S - I) interp: trans-lhs matmul, contraction over m
    corr = lax.dot_general(it_ref[...], mi_ref[...],
                           dimension_numbers=(((0,), (0,)), ((), ())),
                           preferred_element_type=F32)

    cov_ref[...] = kxx * kcc + corr

    # jitter only on the diagonal blocks (no full N x N eye)
    @pl.when(pl.program_id(0) == pl.program_id(1))
    def _():
        bq, bn = cov_ref.shape
        eye = (lax.broadcasted_iota(jnp.int32, (bq, bn), 0)
               == lax.broadcasted_iota(jnp.int32, (bq, bn), 1)).astype(F32)
        cov_ref[...] = cov_ref[...] + jitter * eye


def predictive_covar(x_p, c_p, interp_pad, mid_pad, scal, tile=_TILE):
    """cov = K_X(x,x)*K_C(c,c) + interp^T (S-I) interp + jitter*I, fused+tiled."""
    n_p, d_x = x_p.shape
    d_c = c_p.shape[1]
    m_pad = interp_pad.shape[0]
    bq, gq = _block_and_grid(n_p, tile)

    xt = x_p.T                                             # (d_x, Np)
    ct = c_p.T                                             # (d_c, Np)
    xn = jnp.sum(x_p * x_p, axis=1, keepdims=True)         # (Np, 1)
    cn = jnp.sum(c_p * c_p, axis=1, keepdims=True)
    xnt = xn.T                                             # (1, Np)
    cnt = cn.T

    return pl.pallas_call(
        _predictive_body,
        out_shape=jax.ShapeDtypeStruct((n_p, n_p), F32),
        grid=(gq, gq),
        in_specs=[
            pl.BlockSpec(memory_space=pltpu.MemorySpace.SMEM),   # scalars
            pl.BlockSpec((bq, d_x), lambda i, j: (i, 0)),        # x row block
            pl.BlockSpec((d_x, bq), lambda i, j: (0, j)),        # x^T col block
            pl.BlockSpec((bq, 1), lambda i, j: (i, 0)),          # |x|^2 rows
            pl.BlockSpec((1, bq), lambda i, j: (0, j)),          # |x|^2 cols
            pl.BlockSpec((bq, d_c), lambda i, j: (i, 0)),        # c row block
            pl.BlockSpec((d_c, bq), lambda i, j: (0, j)),        # c^T col block
            pl.BlockSpec((bq, 1), lambda i, j: (i, 0)),          # |c|^2 rows
            pl.BlockSpec((1, bq), lambda i, j: (0, j)),          # |c|^2 cols
            pl.BlockSpec((m_pad, bq), lambda i, j: (0, i)),      # interp cols (rows of cov)
            pl.BlockSpec((m_pad, bq), lambda i, j: (0, j)),      # (S-I)@interp cols
        ],
        out_specs=pl.BlockSpec((bq, bq), lambda i, j: (i, j)),
        compiler_params=pltpu.CompilerParams(
            dimension_semantics=("parallel", "parallel"),        # no revisited outputs
            vmem_limit_bytes=_VMEM_LIMIT),
    )(scal, x_p, xt, xn, xnt, c_p, ct, cn, cnt, interp_pad, mid_pad)


# --------------------------------------------------------------------------
# Forward pass (mirrors KroneckerVariationalStrategy.forward)
# --------------------------------------------------------------------------
def kronecker_variational_forward(x, c, z_x, z_c, inducing_values, chol_s, params,
                                  tile=_TILE):
    assert x.shape[-2] == c.shape[-2]
    n = x.shape[-2]
    m_x, m_c = z_x.shape[-2], z_c.shape[-2]
    m = m_x * m_c
    jitter = params["jitter"]

    # hyperparameters as runtime SMEM arrays (no recompile when they change)
    os_lat, inv2_lat = params["os_latent"], 0.5 / (params["ls_latent"] ** 2)
    os_inp, inv2_inp = params["os_input"], 0.5 / (params["ls_input"] ** 2)
    hyp_latent = jnp.array([os_lat, inv2_lat], dtype=F32)
    hyp_input = jnp.array([os_inp, inv2_inp], dtype=F32)
    scal = jnp.array([jitter, os_lat, inv2_lat, os_inp, inv2_inp], dtype=F32)

    # center the features so the f32 gram-identity distance does not cancel;
    # shift inducing points by the same offset (distances are invariant)
    x_mu = jnp.mean(x.astype(F32), axis=0, keepdims=True)
    c_mu = jnp.mean(c.astype(F32), axis=0, keepdims=True)
    x_c = x.astype(F32) - x_mu
    c_c = c.astype(F32) - c_mu
    z_x_c = z_x.astype(F32) - x_mu
    z_c_c = z_c.astype(F32) - c_mu

    # pad the data axis -> aligned, lane-dense kernel blocks
    n_pad = _round_up(n, tile) if n > tile else _round_up(n, 8)
    x_p = _pad_rows(x_c, n_pad)
    c_p = _pad_rows(c_c, n_pad)

    # cross covariances K(Z, x) (Pallas when large enough, plain JAX when tiny)
    kxz = rbf_covar(z_x_c, x_p, hyp_latent, tile)          # (M_X, Np)
    kcz = rbf_covar(z_c_c, c_p, hyp_input, tile)           # (M_C, Np)

    # tiny inducing-inducing covariances + Kronecker pieces in plain JAX
    kxzz = _rbf_direct(z_x_c, z_x_c, hyp_latent[0], hyp_latent[1])   # (M_X, M_X)
    kczz = _rbf_direct(z_c_c, z_c_c, hyp_input[0], hyp_input[1])     # (M_C, M_C)
    induc_data = (kxz[:, None, :] * kcz[None, :, :]).reshape(m, n_pad)  # (M, Np)
    k_uu = jnp.kron(kxzz, kczz) + jitter * jnp.eye(m, dtype=F32)        # (M, M)

    # TODO(synk): Cholesky + triangular solve have no clean Pallas TPU
    # equivalent; kept in dense JAX (f32 here vs torch's float64 cholesky dtype).
    chol_l = jnp.linalg.cholesky(k_uu)
    interp = jax.scipy.linalg.solve_triangular(chol_l, induc_data, lower=True)  # (M, Np)

    # predictive mean: plain-JAX matvec (keeps the Pallas grid fully parallel
    # and avoids lane-1 masked stores)
    mean_p = interp.T @ inducing_values.astype(F32) + params["mean_constant"]

    # middle term: q(u) covariance minus identity prior covariance
    s_minus_i = chol_s.astype(F32) @ chol_s.astype(F32).T - jnp.eye(m, dtype=F32)
    mid_interp = s_minus_i @ interp                         # (M, Np)

    # pad the contraction dim for MXU / sublane alignment (zero rows are inert)
    m_pad = _pad_m_dim(m)
    interp_pad = _pad_rows(interp, m_pad)
    mid_pad = _pad_rows(mid_interp, m_pad)

    cov_p = predictive_covar(x_p, c_p, interp_pad, mid_pad, scal, tile)

    # note: (i,j)/(j,i) cov tiles are computed independently in f32; downstream
    # Cholesky consumers may want 0.5*(C + C^T) symmetrization.
    return mean_p[:n], cov_p[:n, :n]          # MultivariateNormal(mean, covar)


# --------------------------------------------------------------------------
# pure-JAX reference (for a correctness cross-check)
# --------------------------------------------------------------------------
def _reference_forward(x, c, z_x, z_c, u, chol_s, params):
    def rbf(a, b, ls, os):
        d2 = jnp.sum((a[:, None, :] - b[None, :, :]) ** 2, axis=-1)
        return os * jnp.exp(-0.5 * d2 / (ls * ls))

    n = x.shape[0]
    m_x, m_c = z_x.shape[0], z_c.shape[0]
    m = m_x * m_c
    data_data = (rbf(x, x, params["ls_latent"], params["os_latent"])
                 * rbf(c, c, params["ls_input"], params["os_input"]))
    kxz = rbf(z_x, x, params["ls_latent"], params["os_latent"])
    kcz = rbf(z_c, c, params["ls_input"], params["os_input"])
    induc_data = (kxz[:, None, :] * kcz[None, :, :]).reshape(m, n)
    k_uu = jnp.kron(rbf(z_x, z_x, params["ls_latent"], params["os_latent"]),
                    rbf(z_c, z_c, params["ls_input"], params["os_input"]))
    k_uu = k_uu + params["jitter"] * jnp.eye(m, dtype=F32)
    chol_l = jnp.linalg.cholesky(k_uu)
    interp = jax.scipy.linalg.solve_triangular(chol_l, induc_data, lower=True)
    mean = interp.T @ u + params["mean_constant"]
    s = chol_s @ chol_s.T
    cov = (data_data + params["jitter"] * jnp.eye(n, dtype=F32)
           + interp.T @ (s - jnp.eye(m, dtype=F32)) @ interp)
    return mean, cov


# --------------------------------------------------------------------------
if __name__ == "__main__":
    def run_case(key, n, d_x, d_c, m_x, m_c, tile):
        keys = jax.random.split(key, 6)
        x = jax.random.normal(keys[0], (n, d_x), dtype=F32)
        c = jax.random.normal(keys[1], (n, d_c), dtype=F32)
        z_x = jax.random.normal(keys[2], (m_x, d_x), dtype=F32)   # inducing_points_latent
        z_c = jax.random.normal(keys[3], (m_c, d_c), dtype=F32)   # inducing_points_input
        m = m_x * m_c
        u = 0.1 * jax.random.normal(keys[4], (m,), dtype=F32)     # inducing_values
        chol_s = jnp.eye(m, dtype=F32) + 0.05 * jnp.tril(
            jax.random.normal(keys[5], (m, m), dtype=F32))        # variational cholesky

        params = dict(jitter=1e-3, mean_constant=0.25,
                      ls_latent=1.0, os_latent=1.0,
                      ls_input=1.5, os_input=1.0)

        mean, covar = kronecker_variational_forward(
            x, c, z_x, z_c, u, chol_s, params, tile=tile)
        jax.block_until_ready((mean, covar))

        assert mean.shape == (n,) and covar.shape == (n, n)
        assert bool(jnp.all(jnp.isfinite(mean))) and bool(jnp.all(jnp.isfinite(covar)))

        mean_ref, covar_ref = _reference_forward(x, c, z_x, z_c, u, chol_s, params)
        assert bool(jnp.allclose(mean, mean_ref, atol=2e-2, rtol=2e-2))
        assert bool(jnp.allclose(covar, covar_ref, atol=2e-2, rtol=2e-2))

    key = jax.random.PRNGKey(0)
    k1, k2 = jax.random.split(key)

    # tiny single-block case (matches the original module-scale smoke test)
    run_case(k1, n=8, d_x=2, d_c=3, m_x=4, m_c=4, tile=_TILE)

    # multi-tile case: exercises the 2-D fused grid, padding of n (200 -> 256),
    # the diagonal-only jitter pl.when, and the Pallas cross-covariance path.
    run_case(k2, n=200, d_x=2, d_c=3, m_x=8, m_c=8, tile=128)

    print("KERNEL_OK")
</pallas_src>

<mosaic_0001>
module attributes {stable_mosaic.version = 11 : i64} {
  func.func @_predictive_body(%arg0: i32, %arg1: i32, %arg2: memref<5xf32, #tpu.memory_space<smem>>, %arg3: memref<8x2xf32, #tpu.memory_space<vmem>>, %arg4: memref<2x8xf32, #tpu.memory_space<vmem>>, %arg5: memref<8x1xf32, #tpu.memory_space<vmem>>, %arg6: memref<1x8xf32, #tpu.memory_space<vmem>>, %arg7: memref<8x3xf32, #tpu.memory_space<vmem>>, %arg8: memref<3x8xf32, #tpu.memory_space<vmem>>, %arg9: memref<8x1xf32, #tpu.memory_space<vmem>>, %arg10: memref<1x8xf32, #tpu.memory_space<vmem>>, %arg11: memref<16x8xf32, #tpu.memory_space<vmem>>, %arg12: memref<16x8xf32, #tpu.memory_space<vmem>>, %arg13: memref<8x8xf32, #tpu.memory_space<vmem>>) attributes {dimension_semantics = [#tpu.dimension_semantics<parallel>, #tpu.dimension_semantics<parallel>], iteration_bounds = array<i64: 1, 1>, scalar_prefetch = 0 : i64, scratch_operands = 0 : i64, tpu.core_type = #tpu.core_type<tc>, window_params = [{transform_indices = @transform_0, window_bounds = array<i64: 5>}, {transform_indices = @transform_1, window_bounds = array<i64: 8, 2>}, {transform_indices = @transform_2, window_bounds = array<i64: 2, 8>}, {transform_indices = @transform_3, window_bounds = array<i64: 8, 1>}, {transform_indices = @transform_4, window_bounds = array<i64: 1, 8>}, {transform_indices = @transform_5, window_bounds = array<i64: 8, 3>}, {transform_indices = @transform_6, window_bounds = array<i64: 3, 8>}, {transform_indices = @transform_7, window_bounds = array<i64: 8, 1>}, {transform_indices = @transform_8, window_bounds = array<i64: 1, 8>}, {transform_indices = @transform_9, window_bounds = array<i64: 16, 8>}, {transform_indices = @transform_10, window_bounds = array<i64: 16, 8>}, {transform_indices = @transform_11, window_bounds = array<i64: 8, 8>}]} {
    %c0 = arith.constant 0 : index
    %0 = memref.load %arg2[%c0] : memref<5xf32, #tpu.memory_space<smem>>
    %c1 = arith.constant 1 : index
    %1 = memref.load %arg2[%c1] : memref<5xf32, #tpu.memory_space<smem>>
    %c2 = arith.constant 2 : index
    %2 = memref.load %arg2[%c2] : memref<5xf32, #tpu.memory_space<smem>>
    %c3 = arith.constant 3 : index
    %3 = memref.load %arg2[%c3] : memref<5xf32, #tpu.memory_space<smem>>
    %c4 = arith.constant 4 : index
    %4 = memref.load %arg2[%c4] : memref<5xf32, #tpu.memory_space<smem>>
    %c0_0 = arith.constant 0 : index
    %c0_1 = arith.constant 0 : index
    %5 = vector.load %arg3[%c0_0, %c0_1] : memref<8x2xf32, #tpu.memory_space<vmem>>, vector<8x2xf32>
    %c0_2 = arith.constant 0 : index
    %c0_3 = arith.constant 0 : index
    %6 = vector.load %arg4[%c0_2, %c0_3] : memref<2x8xf32, #tpu.memory_space<vmem>>, vector<2x8xf32>
    %cst = arith.constant dense<0.000000e+00> : vector<8x8xf32>
    %7 = tpu.matmul %5, %6, %cst {dimension_numbers = #tpu.dot_dimension_numbers<[1], [0], [0], [1], [0, 0, 1, 1], [], []>} : vector<8x2xf32>, vector<2x8xf32>, vector<8x8xf32> -> vector<8x8xf32>
    %c0_4 = arith.constant 0 : index
    %c0_5 = arith.constant 0 : index
    %8 = vector.load %arg5[%c0_4, %c0_5] : memref<8x1xf32, #tpu.memory_space<vmem>>, vector<8x1xf32>
    %c0_6 = arith.constant 0 : index
    %c0_7 = arith.constant 0 : index
    %9 = vector.load %arg6[%c0_6, %c0_7] : memref<1x8xf32, #tpu.memory_space<vmem>>, vector<1x8xf32>
    %10 = vector.broadcast %8 : vector<8x1xf32> to vector<8x8xf32>
    %11 = vector.broadcast %9 : vector<1x8xf32> to vector<8x8xf32>
    %12 = arith.addf %10, %11 : vector<8x8xf32>
    %cst_8 = arith.constant 2.000000e+00 : f32
    %13 = vector.broadcast %cst_8 : f32 to vector<8x8xf32>
    %14 = arith.mulf %13, %7 : vector<8x8xf32>
    %15 = arith.subf %12, %14 : vector<8x8xf32>
    %cst_9 = arith.constant 0.000000e+00 : f32
    %16 = vector.broadcast %cst_9 : f32 to vector<8x8xf32>
    %17 = arith.maximumf %15, %16 : vector<8x8xf32>
    %cst_10 = arith.constant 0.000000e+00 : f32
    %18 = arith.subf %cst_10, %2 : f32
    %19 = vector.broadcast %18 : f32 to vector<8x8xf32>
    %20 = arith.mulf %19, %17 : vector<8x8xf32>
    %21 = math.exp %20 : vector<8x8xf32>
    %22 = vector.broadcast %1 : f32 to vector<8x8xf32>
    %23 = arith.mulf %22, %21 : vector<8x8xf32>
    %c0_11 = arith.constant 0 : index
    %c0_12 = arith.constant 0 : index
    %24 = vector.load %arg7[%c0_11, %c0_12] : memref<8x3xf32, #tpu.memory_space<vmem>>, vector<8x3xf32>
    %c0_13 = arith.constant 0 : index
    %c0_14 = arith.constant 0 : index
    %25 = vector.load %arg8[%c0_13, %c0_14] : memref<3x8xf32, #tpu.memory_space<vmem>>, vector<3x8xf32>
    %cst_15 = arith.constant dense<0.000000e+00> : vector<8x8xf32>
    %26 = tpu.matmul %24, %25, %cst_15 {dimension_numbers = #tpu.dot_dimension_numbers<[1], [0], [0], [1], [0, 0, 1, 1], [], []>} : vector<8x3xf32>, vector<3x8xf32>, vector<8x8xf32> -> vector<8x8xf32>
    %c0_16 = arith.constant 0 : index
    %c0_17 = arith.constant 0 : index
    %27 = vector.load %arg9[%c0_16, %c0_17] : memref<8x1xf32, #tpu.memory_space<vmem>>, vector<8x1xf32>
    %c0_18 = arith.constant 0 : index
    %c0_19 = arith.constant 0 : index
    %28 = vector.load %arg10[%c0_18, %c0_19] : memref<1x8xf32, #tpu.memory_space<vmem>>, vector<1x8xf32>
    %29 = vector.broadcast %27 : vector<8x1xf32> to vector<8x8xf32>
    %30 = vector.broadcast %28 : vector<1x8xf32> to vector<8x8xf32>
    %31 = arith.addf %29, %30 : vector<8x8xf32>
    %cst_20 = arith.constant 2.000000e+00 : f32
    %32 = vector.broadcast %cst_20 : f32 to vector<8x8xf32>
    %33 = arith.mulf %32, %26 : vector<8x8xf32>
    %34 = arith.subf %31, %33 : vector<8x8xf32>
    %cst_21 = arith.constant 0.000000e+00 : f32
    %35 = vector.broadcast %cst_21 : f32 to vector<8x8xf32>
    %36 = arith.maximumf %34, %35 : vector<8x8xf32>
    %cst_22 = arith.constant 0.000000e+00 : f32
    %37 = arith.subf %cst_22, %4 : f32
    %38 = vector.broadcast %37 : f32 to vector<8x8xf32>
    %39 = arith.mulf %38, %36 : vector<8x8xf32>
    %40 = math.exp %39 : vector<8x8xf32>
    %41 = vector.broadcast %3 : f32 to vector<8x8xf32>
    %42 = arith.mulf %41, %40 : vector<8x8xf32>
    %c0_23 = arith.constant 0 : index
    %c0_24 = arith.constant 0 : index
    %43 = vector.load %arg11[%c0_23, %c0_24] : memref<16x8xf32, #tpu.memory_space<vmem>>, vector<16x8xf32>
    %c0_25 = arith.constant 0 : index
    %c0_26 = arith.constant 0 : index
    %44 = vector.load %arg12[%c0_25, %c0_26] : memref<16x8xf32, #tpu.memory_space<vmem>>, vector<16x8xf32>
    %cst_27 = arith.constant dense<0.000000e+00> : vector<8x8xf32>
    %45 = tpu.matmul %43, %44, %cst_27 {dimension_numbers = #tpu.dot_dimension_numbers<[0], [0], [1], [1], [0, 1, 1, 1], [], []>} : vector<16x8xf32>, vector<16x8xf32>, vector<8x8xf32> -> vector<8x8xf32>
    %46 = arith.mulf %23, %42 : vector<8x8xf32>
    %47 = arith.addf %46, %45 : vector<8x8xf32>
    %c0_28 = arith.constant 0 : index
    %c0_29 = arith.constant 0 : index
    %48 = vector.load %arg13[%c0_28, %c0_29] : memref<8x8xf32, #tpu.memory_space<vmem>>, vector<8x8xf32>
    tpu.vector_store %arg13[%c0_28, %c0_29], %47 {strides = array<i32>} : memref<8x8xf32, #tpu.memory_space<vmem>>, vector<8x8xf32>,
    %49 = arith.cmpi eq, %arg0, %arg1 : i32
    %50 = arith.extui %49 : i1 to i32
    %c0_i32 = arith.constant 0 : i32
    %51 = arith.cmpi ne, %50, %c0_i32 : i32
    scf.if %51 {
      %52 = tpu.iota {dimensions = array<i32: 0>} : vector<8x8xi32>
      %53 = tpu.iota {dimensions = array<i32: 1>} : vector<8x8xi32>
      %54 = arith.cmpi eq, %52, %53 : vector<8x8xi32>
      %55 = arith.extui %54 : vector<8x8xi1> to vector<8x8xi32>
      %56 = arith.sitofp %55 : vector<8x8xi32> to vector<8x8xf32>
      %c0_30 = arith.constant 0 : index
      %c0_31 = arith.constant 0 : index
      %57 = vector.load %arg13[%c0_30, %c0_31] : memref<8x8xf32, #tpu.memory_space<vmem>>, vector<8x8xf32>
      %58 = vector.broadcast %0 : f32 to vector<8x8xf32>
      %59 = arith.mulf %58, %56 : vector<8x8xf32>
      %60 = arith.addf %57, %59 : vector<8x8xf32>
      %c0_32 = arith.constant 0 : index
      %c0_33 = arith.constant 0 : index
      %61 = vector.load %arg13[%c0_32, %c0_33] : memref<8x8xf32, #tpu.memory_space<vmem>>, vector<8x8xf32>
      tpu.vector_store %arg13[%c0_32, %c0_33], %60 {strides = array<i32>} : memref<8x8xf32, #tpu.memory_space<vmem>>, vector<8x8xf32>,
    } else {
    }
    return
  }
  func.func @transform_0(%arg0: i32, %arg1: i32) -> i32 {
    %c0_i32 = arith.constant 0 : i32
    %c0_i32_0 = arith.constant 0 : i32
    return %c0_i32 : i32
  }
  func.func @transform_1(%arg0: i32, %arg1: i32) -> (i32, i32) {
    %c0_i32 = arith.constant 0 : i32
    %c0_i32_0 = arith.constant 0 : i32
    return %arg0, %c0_i32 : i32, i32
  }
  func.func @transform_2(%arg0: i32, %arg1: i32) -> (i32, i32) {
    %c0_i32 = arith.constant 0 : i32
    %c0_i32_0 = arith.constant 0 : i32
    return %c0_i32, %arg1 : i32, i32
  }
  func.func @transform_3(%arg0: i32, %arg1: i32) -> (i32, i32) {
    %c0_i32 = arith.constant 0 : i32
    %c0_i32_0 = arith.constant 0 : i32
    return %arg0, %c0_i32 : i32, i32
  }
  func.func @transform_4(%arg0: i32, %arg1: i32) -> (i32, i32) {
    %c0_i32 = arith.constant 0 : i32
    %c0_i32_0 = arith.constant 0 : i32
    return %c0_i32, %arg1 : i32, i32
  }
  func.func @transform_5(%arg0: i32, %arg1: i32) -> (i32, i32) {
    %c0_i32 = arith.constant 0 : i32
    %c0_i32_0 = arith.constant 0 : i32
    return %arg0, %c0_i32 : i32, i32
  }
  func.func @transform_6(%arg0: i32, %arg1: i32) -> (i32, i32) {
    %c0_i32 = arith.constant 0 : i32
    %c0_i32_0 = arith.constant 0 : i32
    return %c0_i32, %arg1 : i32, i32
  }
  func.func @transform_7(%arg0: i32, %arg1: i32) -> (i32, i32) {
    %c0_i32 = arith.constant 0 : i32
    %c0_i32_0 = arith.constant 0 : i32
    return %arg0, %c0_i32 : i32, i32
  }
  func.func @transform_8(%arg0: i32, %arg1: i32) -> (i32, i32) {
    %c0_i32 = arith.constant 0 : i32
    %c0_i32_0 = arith.constant 0 : i32
    return %c0_i32, %arg1 : i32, i32
  }
  func.func @transform_9(%arg0: i32, %arg1: i32) -> (i32, i32) {
    %c0_i32 = arith.constant 0 : i32
    %c0_i32_0 = arith.constant 0 : i32
    return %c0_i32, %arg0 : i32, i32
  }
  func.func @transform_10(%arg0: i32, %arg1: i32) -> (i32, i32) {
    %c0_i32 = arith.constant 0 : i32
    %c0_i32_0 = arith.constant 0 : i32
    return %c0_i32, %arg1 : i32, i32
  }
  func.func @transform_11(%arg0: i32, %arg1: i32) -> (i32, i32) {
    %c0_i32 = arith.constant 0 : i32
    return %arg0, %arg1 : i32, i32
  }
}

</mosaic_0001>

<llo_original>
// kernel: tpu_custom_call.1
$region0: #{tpu_custom_call.1}
  #allocation0 [shape = 'u32[]', space=smem, size = 0x4, offset = 0x4, fixed_abs, tag = 'smem constant byte address 0x4 - core index']
  #allocation1 [shape = 'u32[144,128]{1,0:T(1,128)}', space=vmem, size = 0x12000, scoped, tag = 'internal scratch']
  %s0 = inlined_call_operand.vmem [shape: f32[5], index: 0, kind: input, shape index: {}]
  %s1 = inlined_call_operand.vmem [shape: f32[8,2], index: 1, kind: input, shape index: {}]
  %s2 = inlined_call_operand.vmem [shape: f32[2,8], index: 2, kind: input, shape index: {}]
  %s3 = inlined_call_operand.vmem [shape: f32[8,1], index: 3, kind: input, shape index: {}]
  %s4 = inlined_call_operand.vmem [shape: f32[1,8], index: 4, kind: input, shape index: {}]
  %s5 = inlined_call_operand.vmem [shape: f32[8,3], index: 5, kind: input, shape index: {}]
  %s6 = inlined_call_operand.vmem [shape: f32[3,8], index: 6, kind: input, shape index: {}]
  %s7 = inlined_call_operand.vmem [shape: f32[8,1], index: 7, kind: input, shape index: {}]
  %s8 = inlined_call_operand.vmem [shape: f32[1,8], index: 8, kind: input, shape index: {}]
  %s9 = inlined_call_operand.vmem [shape: f32[16,8], index: 9, kind: input, shape index: {}]
  %s10 = inlined_call_operand.vmem [shape: f32[16,8], index: 10, kind: input, shape index: {}]
  %s11 = inlined_call_operand.hbm [shape: f32[8,8], index: 11, kind: output, shape index: {}]
  %s12 = sld [smem:[#allocation0]]
  $region62: #{tpu_custom_call.1} parent=0
    _
  %s14 = ssub.s32 1, %s12
  %s15 = scalar_select 0, %s14, %s12
  $region1: #{tpu_custom_call.1} parent=0
    #allocation2 [shape = 'u8[512]{0}', space=smem, size = 0x200, scoped, tag = 'input window, operand 0, single buffered']
    #allocation3 [shape = 's32[1]{0}', space=sflag, size = 0x4, scoped, tag = 'scoped memory for tpu_custom_call.1']
    #allocation4 [shape = 's32[1]{0}', space=sflag, size = 0x4, scoped, tag = 'scoped memory for tpu_custom_call.1']
    #allocation5 [shape = 'u8[4096]{0}', space=vmem, size = 0x1000, scoped, tag = 'output window, operand 0, single buffered']
    %16 = vsyncpa [#allocation4], 0
    %17 = vsyncpa [#allocation3], 0
    // Predicated region
    $region2: #{tpu_custom_call.1} parent=1 // pred_check
      _
    $region3: #{tpu_custom_call.1} parent=1 // pred_check_branch
      %19 = sbr.rel (0) target = $region5
    $region4: #{tpu_custom_call.1} parent=1 // pred_region
      %s21 = ssub.s32 16, 16
      %22 = vsyncadd [#allocation4], %s21
      %s24 = sshll.u32 %s0, 4
      %s25 = int_to_ptr.vmem [resolvable:$true] %s24
      %27 = dma.vmem_to_smem %s25, 16, [#allocation2], [#allocation4]
    $region5: #{tpu_custom_call.1} parent=1 // pred_fallthru
      _
    // Predicated region
    $region6: #{tpu_custom_call.1} parent=1 // pred_check
      _
    $region7: #{tpu_custom_call.1} parent=1 // pred_check_branch
      %29 = sbr.rel (0) target = $region9
    $region8: #{tpu_custom_call.1} parent=1 // pred_region
      _
    $region9: #{tpu_custom_call.1} parent=1 // pred_fallthru
      _
    // Predicated region
    $region10: #{tpu_custom_call.1} parent=1 // pred_check
      _
    $region11: #{tpu_custom_call.1} parent=1 // pred_check_branch
      %31 = sbr.rel (0) target = $region13
    $region12: #{tpu_custom_call.1} parent=1 // pred_region
      _
    $region13: #{tpu_custom_call.1} parent=1 // pred_fallthru
      _
    // Predicated region
    $region14: #{tpu_custom_call.1} parent=1 // pred_check
      _
    $region15: #{tpu_custom_call.1} parent=1 // pred_check_branch
      %33 = sbr.rel (0) target = $region17
    $region16: #{tpu_custom_call.1} parent=1 // pred_region
      _
    $region17: #{tpu_custom_call.1} parent=1 // pred_fallthru
      _
    // Predicated region
    $region18: #{tpu_custom_call.1} parent=1 // pred_check
      _
    $region19: #{tpu_custom_call.1} parent=1 // pred_check_branch
      %35 = sbr.rel (0) target = $region21
    $region20: #{tpu_custom_call.1} parent=1 // pred_region
      _
    $region21: #{tpu_custom_call.1} parent=1 // pred_fallthru
      _
    // Predicated region
    $region22: #{tpu_custom_call.1} parent=1 // pred_check
      _
    $region23: #{tpu_custom_call.1} parent=1 // pred_check_branch
      %37 = sbr.rel (0) target = $region25
    $region24: #{tpu_custom_call.1} parent=1 // pred_region
      _
    $region25: #{tpu_custom_call.1} parent=1 // pred_fallthru
      _
    // Predicated region
    $region26: #{tpu_custom_call.1} parent=1 // pred_check
      _
    $region27: #{tpu_custom_call.1} parent=1 // pred_check_branch
      %39 = sbr.rel (0) target = $region29
    $region28: #{tpu_custom_call.1} parent=1 // pred_region
      _
    $region29: #{tpu_custom_call.1} parent=1 // pred_fallthru
      _
    // Predicated region
    $region30: #{tpu_custom_call.1} parent=1 // pred_check
      _
    $region31: #{tpu_custom_call.1} parent=1 // pred_check_branch
      %41 = sbr.rel (0) target = $region33
    $region32: #{tpu_custom_call.1} parent=1 // pred_region
      _
    $region33: #{tpu_custom_call.1} parent=1 // pred_fallthru
      _
    // Predicated region
    $region34: #{tpu_custom_call.1} parent=1 // pred_check
      _
    $region35: #{tpu_custom_call.1} parent=1 // pred_check_branch
      %43 = sbr.rel (0) target = $region37
    $region36: #{tpu_custom_call.1} parent=1 // pred_region
      _
    $region37: #{tpu_custom_call.1} parent=1 // pred_fallthru
      _
    // Predicated region
    $region38: #{tpu_custom_call.1} parent=1 // pred_check
      _
    $region39: #{tpu_custom_call.1} parent=1 // pred_check_branch
      %45 = sbr.rel (0) target = $region41
    $region40: #{tpu_custom_call.1} parent=1 // pred_region
      _
    $region41: #{tpu_custom_call.1} parent=1 // pred_fallthru
      _
    // Predicated region
    $region42: #{tpu_custom_call.1} parent=1 // pred_check
      _
    $region43: #{tpu_custom_call.1} parent=1 // pred_check_branch
      %47 = sbr.rel (0) target = $region45
    $region44: #{tpu_custom_call.1} parent=1 // pred_region
      _
    $region45: #{tpu_custom_call.1} parent=1 // pred_fallthru
      _
    // Predicated region
    $region46: #{tpu_custom_call.1} parent=1 // pred_check
      _
    $region47: #{tpu_custom_call.1} parent=1 // pred_check_branch
      %49 = sbr.rel (0) target = $region49
    $region48: #{tpu_custom_call.1} parent=1 // pred_region
      %50 = dma.done [#allocation4], 16
    $region49: #{tpu_custom_call.1} parent=1 // pred_fallthru
      _
    %51 = sfence
    %s52 = sld [smem:[#allocation2]]
    %s53 = sld [smem:[#allocation2 + $0x1]]
    %s54 = sld [smem:[#allocation2 + $0x2]]
    %s55 = sld [smem:[#allocation2 + $0x3]]
    %s56 = sld [smem:[#allocation2 + $0x4]]
    %v57 = vld [vmem:[%s1] sm:$0xff]
    %v58 = vld [vmem:[%s2] sm:$0x3]
    %vm59 = vcmask 15360
    %v61 = vsel %vm59, %v57, 0
    %vm63 = vcmask 1041408
    %v65 = vsel %vm63, %v58, 0
    %67 = vmatprep.subr.mxu0 0.0
    %68 = vmatpush1.msra.mxu0 0.0
    %69 = vmatprep.subr.mxu0 0.0
    %70 = vmatpush1.msra.mxu0 0.0
    %71 = vmatprep.subr.mxu0 0.0
    %72 = vmatpush1.msra.mxu0 0.0
    %73 = vmatprep.subr.mxu0 0.0
    %74 = vmatpush1.msra.mxu0 0.0
    %75 = vmatprep.subr.mxu0 0.0
    %76 = vmatpush1.msra.mxu0 0.0
    %77 = vmatprep.subr.mxu0 0.0
    %78 = vmatpush1.msra.mxu0 0.0
    %79 = vmatprep.subr.mxu0 0.0
    %80 = vmatpush1.msra.mxu0 0.0
    %81 = vmatprep.subr.mxu0 0.0
    %82 = vmatpush1.msra.mxu0 0.0
    %83 = vmatprep.subr.mxu0 0.0
    %84 = vmatpush1.msra.mxu0 0.0
    %85 = vmatprep.subr.mxu0 0.0
    %86 = vmatpush1.msra.mxu0 0.0
    %87 = vmatprep.subr.mxu0 0.0
    %88 = vmatpush1.msra.mxu0 0.0
    %89 = vmatprep.subr.mxu0 0.0
    %90 = vmatpush1.msra.mxu0 0.0
    %91 = vmatprep.subr.mxu0 0.0
    %92 = vmatpush1.msra.mxu0 0.0
    %93 = vmatprep.subr.mxu0 0.0
    %94 = vmatpush1.msra.mxu0 0.0
    %95 = vmatprep.subr.mxu0 0.0
    %96 = vmatpush1.msra.mxu0 0.0
    %97 = vmatprep.subr.mxu0 0.0
    %98 = vmatpush1.msra.mxu0 %v65
    %99 = vmatprep.subr.mxu0 0.0
    %100 = vmatpush2.msra.mxu0 0.0
    %101 = vmatprep.subr.mxu0 0.0
    %102 = vmatpush2.msra.mxu0 0.0
    %103 = vmatprep.subr.mxu0 0.0
    %104 = vmatpush2.msra.mxu0 0.0
    %105 = vmatprep.subr.mxu0 0.0
    %106 = vmatpush2.msra.mxu0 0.0
    %107 = vmatprep.subr.mxu0 0.0
    %108 = vmatpush2.msra.mxu0 0.0
    %109 = vmatprep.subr.mxu0 0.0
    %110 = vmatpush2.msra.mxu0 0.0
    %111 = vmatprep.subr.mxu0 0.0
    %112 = vmatpush2.msra.mxu0 0.0
    %113 = vmatprep.subr.mxu0 0.0
    %114 = vmatpush2.msra.mxu0 0.0
    %115 = vmatprep.subr.mxu0 0.0
    %116 = vmatpush2.msra.mxu0 0.0
    %117 = vmatprep.subr.mxu0 0.0
    %118 = vmatpush2.msra.mxu0 0.0
    %119 = vmatprep.subr.mxu0 0.0
    %120 = vmatpush2.msra.mxu0 0.0
    %121 = vmatprep.subr.mxu0 0.0
    %122 = vmatpush2.msra.mxu0 0.0
    %123 = vmatprep.subr.mxu0 0.0
    %124 = vmatpush2.msra.mxu0 0.0
    %125 = vmatprep.subr.mxu0 0.0
    %126 = vmatpush2.msra.mxu0 0.0
    %127 = vmatprep.subr.mxu0 0.0
    %128 = vmatpush2.msra.mxu0 0.0
    %129 = vmatprep.subr.mxu0 0.0
    %130 = vmatpush2.msra.mxu0 0.0
    %131 = vmatprep.mubr.f32.mxu0 0.0
    %132 = vmatmul.mubr.f32.gmra.mxu0 %v61
    %v133 = vpop.f32.mrf.mxu0
    %v134 = vadd.f32 0.0, %v133
    %v135 = vpop.f32.mrf.mxu0
    %136 = vdwg.mxu0
    %v137 = vld [vmem:[%s3] sm:$0xff]
    %v138 = vld [vmem:[%s4] sm:$0x1]
    %140 = vset.pattern.permute.xlu0 0
    %141 = vperm.xlu0 %140, %v137
    %v142 = vpop.permute.xlu0 %141
    %v145 = vlaneseq
    %v146 = vshrl.u32 %v145, 7
    %v147 = vsub.s32 0, %v146
    %v148 = vrot.slane %v138, %v147
    %v150 = vadd.f32 %v142, %v148
    %v151 = vmul.f32 %v134, 2.0
    %v152 = vsub.f32 %v150, %v151
    %v153 = vmax.f32 %v152, 0.0
    %s154 = ssub.f32 0.0, %s54
    %v155 = vstv %s154
    %v156 = vmul.f32 %v155, %v153
    %v157 = vmul.f32 %v156, 1.442695
    %v158 = vpow.pop %v157
    %v159 = vstv %s53
    %v160 = vmul.f32 %v159, %v158
    %v161 = vld [vmem:[%s5] sm:$0xff]
    %v162 = vld [vmem:[%s6] sm:$0x7]
    %vm163 = vcmask 23552
    %v165 = vsel %vm163, %v161, 0
    %vm167 = vcmask 1042432
    %v169 = vsel %vm167, %v162, 0
    %171 = vmatprep.subr.mxu0 0.0
    %172 = vmatpush1.msra.mxu0 0.0
    %173 = vmatprep.subr.mxu0 0.0
    %174 = vmatpush1.msra.mxu0 0.0
    %175 = vmatprep.subr.mxu0 0.0
    %176 = vmatpush1.msra.mxu0 0.0
    %177 = vmatprep.subr.mxu0 0.0
    %178 = vmatpush1.msra.mxu0 0.0
    %179 = vmatprep.subr.mxu0 0.0
    %180 = vmatpush1.msra.mxu0 0.0
    %181 = vmatprep.subr.mxu0 0.0
    %182 = vmatpush1.msra.mxu0 0.0
    %183 = vmatprep.subr.mxu0 0.0
    %184 = vmatpush1.msra.mxu0 0.0
    %185 = vmatprep.subr.mxu0 0.0
    %186 = vmatpush1.msra.mxu0 0.0
    %187 = vmatprep.subr.mxu0 0.0
    %188 = vmatpush1.msra.mxu0 0.0
    %189 = vmatprep.subr.mxu0 0.0
    %190 = vmatpush1.msra.mxu0 0.0
    %191 = vmatprep.subr.mxu0 0.0
    %192 = vmatpush1.msra.mxu0 0.0
    %193 = vmatprep.subr.mxu0 0.0
    %194 = vmatpush1.msra.mxu0 0.0
    %195 = vmatprep.subr.mxu0 0.0
    %196 = vmatpush1.msra.mxu0 0.0
    %197 = vmatprep.subr.mxu0 0.0
    %198 = vmatpush1.msra.mxu0 0.0
    %199 = vmatprep.subr.mxu0 0.0
    %200 = vmatpush1.msra.mxu0 0.0
    %201 = vmatprep.subr.mxu0 0.0
    %202 = vmatpush1.msra.mxu0 %v169
    %203 = vmatprep.subr.mxu0 0.0
    %204 = vmatpush2.msra.mxu0 0.0
    %205 = vmatprep.subr.mxu0 0.0
    %206 = vmatpush2.msra.mxu0 0.0
    %207 = vmatprep.subr.mxu0 0.0
    %208 = vmatpush2.msra.mxu0 0.0
    %209 = vmatprep.subr.mxu0 0.0
    %210 = vmatpush2.msra.mxu0 0.0
    %211 = vmatprep.subr.mxu0 0.0
    %212 = vmatpush2.msra.mxu0 0.0
    %213 = vmatprep.subr.mxu0 0.0
    %214 = vmatpush2.msra.mxu0 0.0
    %215 = vmatprep.subr.mxu0 0.0
    %216 = vmatpush2.msra.mxu0 0.0
    %217 = vmatprep.subr.mxu0 0.0
    %218 = vmatpush2.msra.mxu0 0.0
    %219 = vmatprep.subr.mxu0 0.0
    %220 = vmatpush2.msra.mxu0 0.0
    %221 = vmatprep.subr.mxu0 0.0
    %222 = vmatpush2.msra.mxu0 0.0
    %223 = vmatprep.subr.mxu0 0.0
    %224 = vmatpush2.msra.mxu0 0.0
    %225 = vmatprep.subr.mxu0 0.0
    %226 = vmatpush2.msra.mxu0 0.0
    %227 = vmatprep.subr.mxu0 0.0
    %228 = vmatpush2.msra.mxu0 0.0
    %229 = vmatprep.subr.mxu0 0.0
    %230 = vmatpush2.msra.mxu0 0.0
    %231 = vmatprep.subr.mxu0 0.0
    %232 = vmatpush2.msra.mxu0 0.0
    %233 = vmatprep.subr.mxu0 0.0
    %234 = vmatpush2.msra.mxu0 0.0
    %235 = vmatprep.mubr.f32.mxu0 0.0
    %236 = vmatmul.mubr.f32.gmra.mxu0 %v165
    %v237 = vpop.f32.mrf.mxu0
    %v238 = vadd.f32 0.0, %v237
    %v239 = vpop.f32.mrf.mxu0
    %240 = vdwg.mxu0
    %v241 = vld [vmem:[%s7] sm:$0xff]
    %v242 = vld [vmem:[%s8] sm:$0x1]
    %244 = vset.pattern.permute.xlu0 0
    %245 = vperm.xlu0 %244, %v241
    %v246 = vpop.permute.xlu0 %245
    %v249 = vlaneseq
    %v250 = vshrl.u32 %v249, 7
    %v251 = vsub.s32 0, %v250
    %v252 = vrot.slane %v242, %v251
    %v254 = vadd.f32 %v246, %v252
    %v255 = vmul.f32 %v238, 2.0
    %v256 = vsub.f32 %v254, %v255
    %v257 = vmax.f32 %v256, 0.0
    %s258 = ssub.f32 0.0, %s56
    %v259 = vstv %s258
    %v260 = vmul.f32 %v259, %v257
    %v261 = vmul.f32 %v260, 1.442695
    %v262 = vpow.pop %v261
    %v263 = vstv %s55
    %v264 = vmul.f32 %v263, %v262
    %v265 = vld [vmem:[%s9] sm:$0xff]
    %v266 = vld [vmem:[%s9 + $0x8] sm:$0xff]
    %v267 = vld [vmem:[%s10] sm:$0xff]
    %v268 = vld [vmem:[%s10 + $0x8] sm:$0xff]
    %269 = vxpose.xlu0.b32.start [1/16] %v265, 128
    %270 = vxpose.xlu0.b32.cont [2/16] %v266, 128
    %271 = vxpose.xlu0.b32.cont [3/16] 0.0, 128
    %272 = vxpose.xlu0.b32.cont [4/16] 0.0, 128
    %273 = vxpose.xlu0.b32.cont [5/16] 0.0, 128
    %274 = vxpose.xlu0.b32.cont [6/16] 0.0, 128
    %275 = vxpose.xlu0.b32.cont [7/16] 0.0, 128
    %276 = vxpose.xlu0.b32.cont [8/16] 0.0, 128
    %277 = vxpose.xlu0.b32.cont [9/16] 0.0, 128
    %278 = vxpose.xlu0.b32.cont [10/16] 0.0, 128
    %279 = vxpose.xlu0.b32.cont [11/16] 0.0, 128
    %280 = vxpose.xlu0.b32.cont [12/16] 0.0, 128
    %281 = vxpose.xlu0.b32.cont [13/16] 0.0, 128
    %282 = vxpose.xlu0.b32.cont [14/16] 0.0, 128
    %283 = vxpose.xlu0.b32.cont [15/16] 0.0, 128
    %284 = vxpose.xlu0.b32.end [16/16] 0.0, 128
    %v285 = vpop.trf.xlu0
    %v286 = vpop.trf.xlu0
    %v287 = vpop.trf.xlu0
    %v288 = vpop.trf.xlu0
    %v289 = vpop.trf.xlu0
    %v290 = vpop.trf.xlu0
    %v291 = vpop.trf.xlu0
    %v292 = vpop.trf.xlu0
    %v293 = vpop.trf.xlu0
    %v294 = vpop.trf.xlu0
    %v295 = vpop.trf.xlu0
    %v296 = vpop.trf.xlu0
    %v297 = vpop.trf.xlu0
    %v298 = vpop.trf.xlu0
    %v299 = vpop.trf.xlu0
    %v300 = vpop.trf.xlu0
    %vm301 = vcmask 130048
    %v303 = vsel %vm301, %v285, 0
    %305 = vmatprep.subr.mxu0 0.0
    %306 = vmatpush1.msra.mxu0 0.0
    %307 = vmatprep.subr.mxu0 0.0
    %308 = vmatpush1.msra.mxu0 0.0
    %309 = vmatprep.subr.mxu0 0.0
    %310 = vmatpush1.msra.mxu0 0.0
    %311 = vmatprep.subr.mxu0 0.0
    %312 = vmatpush1.msra.mxu0 0.0
    %313 = vmatprep.subr.mxu0 0.0
    %314 = vmatpush1.msra.mxu0 0.0
    %315 = vmatprep.subr.mxu0 0.0
    %316 = vmatpush1.msra.mxu0 0.0
    %317 = vmatprep.subr.mxu0 0.0
    %318 = vmatpush1.msra.mxu0 0.0
    %319 = vmatprep.subr.mxu0 0.0
    %320 = vmatpush1.msra.mxu0 0.0
    %321 = vmatprep.subr.mxu0 0.0
    %322 = vmatpush1.msra.mxu0 0.0
    %323 = vmatprep.subr.mxu0 0.0
    %324 = vmatpush1.msra.mxu0 0.0
    %325 = vmatprep.subr.mxu0 0.0
    %326 = vmatpush1.msra.mxu0 0.0
    %327 = vmatprep.subr.mxu0 0.0
    %328 = vmatpush1.msra.mxu0 0.0
    %329 = vmatprep.subr.mxu0 0.0
    %330 = vmatpush1.msra.mxu0 0.0
    %331 = vmatprep.subr.mxu0 0.0
    %332 = vmatpush1.msra.mxu0 0.0
    %333 = vmatprep.subr.mxu0 0.0
    %334 = vmatpush1.msra.mxu0 %v268
    %335 = vmatprep.subr.mxu0 0.0
    %336 = vmatpush1.msra.mxu0 %v267
    %337 = vmatprep.subr.mxu0 0.0
    %338 = vmatpush2.msra.mxu0 0.0
    %339 = vmatprep.subr.mxu0 0.0
    %340 = vmatpush2.msra.mxu0 0.0
    %341 = vmatprep.subr.mxu0 0.0
    %342 = vmatpush2.msra.mxu0 0.0
    %343 = vmatprep.subr.mxu0 0.0
    %344 = vmatpush2.msra.mxu0 0.0
    %345 = vmatprep.subr.mxu0 0.0
    %346 = vmatpush2.msra.mxu0 0.0
    %347 = vmatprep.subr.mxu0 0.0
    %348 = vmatpush2.msra.mxu0 0.0
    %349 = vmatprep.subr.mxu0 0.0
    %350 = vmatpush2.msra.mxu0 0.0
    %351 = vmatprep.subr.mxu0 0.0
    %352 = vmatpush2.msra.mxu0 0.0
    %353 = vmatprep.subr.mxu0 0.0
    %354 = vmatpush2.msra.mxu0 0.0
    %355 = vmatprep.subr.mxu0 0.0
    %356 = vmatpush2.msra.mxu0 0.0
    %357 = vmatprep.subr.mxu0 0.0
    %358 = vmatpush2.msra.mxu0 0.0
    %359 = vmatprep.subr.mxu0 0.0
    %360 = vmatpush2.msra.mxu0 0.0
    %361 = vmatprep.subr.mxu0 0.0
    %362 = vmatpush2.msra.mxu0 0.0
    %363 = vmatprep.subr.mxu0 0.0
    %364 = vmatpush2.msra.mxu0 0.0
    %365 = vmatprep.subr.mxu0 0.0
    %366 = vmatpush2.msra.mxu0 0.0
    %367 = vmatprep.subr.mxu0 0.0
    %368 = vmatpush2.msra.mxu0 0.0
    %369 = vmatprep.mubr.f32.mxu0 0.0
    %370 = vmatmul.mubr.f32.gmra.mxu0 %v303
    %v371 = vpop.f32.mrf.mxu0
    %v372 = vadd.f32 0.0, %v371
    %v373 = vpop.f32.mrf.mxu0
    %374 = vdwg.mxu0
    %v375 = vmul.f32 %v160, %v264
    %v376 = vadd.f32 %v375, %v372
    %vm377 = vcmask 64512
    %378 = vst.msk [vmem:[#allocation5] sm:$0xff] %vm377, %v376
    %p379 = scmp.eq.s32.totalorder 0, 0
    // Predicated region
    $region50: #{tpu_custom_call.1} parent=1 // pred_check
      %p380 = pneg %p379
    $region51: #{tpu_custom_call.1} parent=1 // pred_check_branch
      %382 = sbr.rel (%p380) target = $region53
    $region52: #{tpu_custom_call.1} parent=1 // pred_region
      %v383 = vlaneseq
      %v384 = vshrl.u32 %v383, 7
      %v385 = vlaneseq
      %v386 = vand.u32 %v385, 127
      %vm387 = vcmp.eq.s32.totalorder %v384, %v386
      %v388 = vsel %vm387, 1, 0
      %v389 = vcvt.s32.f32 %v388
      %v390 = vld [vmem:[#allocation5] sm:$0xff]
      %v391 = vstv %s52
      %v392 = vmul.f32 %v391, %v389
      %v393 = vadd.f32 %v390, %v392
      %394 = vst.msk [vmem:[#allocation5] sm:$0xff] %vm377, %v393
    $region53: #{tpu_custom_call.1} parent=1 // pred_fallthru
      _
    // Predicated region
    $region54: #{tpu_custom_call.1} parent=1 // pred_check
      _
    $region55: #{tpu_custom_call.1} parent=1 // pred_check_branch
      %396 = sbr.rel (0) target = $region57
    $region56: #{tpu_custom_call.1} parent=1 // pred_region
      %s398 = ssub.s32 128, 128
      %399 = vsyncadd [#allocation3], %s398
      %s401 = sshll.u32 [#allocation5], 4
      %s402 = int_to_ptr.vmem [resolvable:$true] %s401
      %404 = dma.vmem_to_hbm [thread:$0]  %s402, 128, %s11, [#allocation3]
    $region57: #{tpu_custom_call.1} parent=1 // pred_fallthru
      _
    // Predicated region
    $region58: #{tpu_custom_call.1} parent=1 // pred_check
      _
    $region59: #{tpu_custom_call.1} parent=1 // pred_check_branch
      %406 = sbr.rel (0) target = $region61
    $region60: #{tpu_custom_call.1} parent=1 // pred_region
      %407 = dma.done [#allocation3], 128
    $region61: #{tpu_custom_call.1} parent=1 // pred_fallthru
      _
    %408 = vsyncpa [#allocation3], 1
    %409 = vsyncpa [#allocation4], 1

</llo_original>
